<compile_context>
chip_gen: v6e
topology: v6e:2x2x1
jax: 0.10.0
libtpu: 0.0.40
codegen_flags: <defaults>
</compile_context>

<pallas_src>
import functools

import jax
import jax.numpy as jnp
from jax.experimental import pallas as pl
from jax.experimental.pallas import tpu as pltpu


_LANE_COLS = 1024        # lane-dense width: multiple of 128 (8 vregs wide)
_MAX_BLOCK_ROWS = 512    # 512 x 1024 f32 = 2 MiB/tile; x2 arrays x2 buffers = 8 MiB VMEM
                         # (fits default scoped VMEM on v5e/v6e/v7x)


def _round_up(x, m):
    return ((x + m - 1) // m) * m


def _elementwise_kernel(func, x_ref, o_ref):
    x = x_ref[...]
    # One explicit upcast for sub-32-bit float inputs: v5e has no bf16
    # VPU/EUP path, so implicit per-op casts would multiply VALU work.
    if jnp.issubdtype(x.dtype, jnp.floating) and x.dtype.itemsize < 4:
        x = x.astype(jnp.float32)
    o_ref[...] = func(x).astype(o_ref.dtype)


def lambda_module(func):
    """Returns a callable equivalent to LambdaModule(func).forward for an
    elementwise `func` applied to a single tensor (any rank/layout).

    Contract: `func` must be purely elementwise; reductions or any
    cross-element dependency would be silently broken by the tiling.
    """
    kernel = functools.partial(_elementwise_kernel, func)

    @jax.jit
    def forward(x):
        orig_shape = x.shape
        dtype = x.dtype
        n = x.size  # static at trace time

        # Sublane multiple depends on element width (f32: 8, bf16: 16, i8: 32).
        sublane = 8 * max(1, 4 // dtype.itemsize)

        cols = _LANE_COLS
        rows = _round_up(pl.cdiv(n, cols), sublane)
        block_rows = min(_MAX_BLOCK_ROWS, rows)   # both are sublane multiples
        grid_rows = pl.cdiv(rows, block_rows)
        total_rows = grid_rows * block_rows

        # Flatten to a lane-dense 2-D slab, padding the tail.
        flat = jnp.pad(x.reshape(-1), (0, total_rows * cols - n))
        x2d = flat.reshape(total_rows, cols)

        out2d = pl.pallas_call(
            kernel,
            out_shape=jax.ShapeDtypeStruct(x2d.shape, dtype),
            grid=(grid_rows,),
            in_specs=[pl.BlockSpec((block_rows, cols), lambda i: (i, 0))],
            out_specs=pl.BlockSpec((block_rows, cols), lambda i: (i, 0)),
            # Same-shape, same-dtype elementwise op: reuse the input buffer.
            input_output_aliases={0: 0},
            compiler_params=pltpu.CompilerParams(
                dimension_semantics=("parallel",),
            ),
        )(x2d)

        # Strip padding (func(padding) must not leak into the result).
        return out2d.reshape(-1)[:n].reshape(orig_shape)

    return forward


if __name__ == "__main__":
    key = jax.random.PRNGKey(0)
    # Small NCHW feature map: (B=2, C=4, H=16, W=16)
    x = jax.random.normal(key, (2, 4, 16, 16), dtype=jnp.float32)

    # Representative wrapped func (deterministic, elementwise).
    module = lambda_module(jax.nn.sigmoid)

    out = jax.block_until_ready(module(x))

    # Sanity check against plain-JAX reference of the same func.
    ref = jax.nn.sigmoid(x)
    assert out.shape == x.shape and out.dtype == x.dtype
    assert jnp.max(jnp.abs(out - ref)) < 1e-6

    print("KERNEL_OK")
</pallas_src>

<mosaic_0001>
module attributes {stable_mosaic.version = 11 : i64} {
  func.func @_elementwise_kernel(%arg0: i32, %arg1: memref<8x1024xf32, #tpu.memory_space<vmem>>, %arg2: memref<8x1024xf32, #tpu.memory_space<vmem>>) attributes {dimension_semantics = [#tpu.dimension_semantics<parallel>], iteration_bounds = array<i64: 1>, scalar_prefetch = 0 : i64, scratch_operands = 0 : i64, tpu.core_type = #tpu.core_type<tc>, window_params = [{transform_indices = @transform_0, window_bounds = array<i64: 8, 1024>}, {transform_indices = @transform_1, window_bounds = array<i64: 8, 1024>}]} {
    %c0 = arith.constant 0 : index
    %c0_0 = arith.constant 0 : index
    %0 = vector.load %arg1[%c0, %c0_0] : memref<8x1024xf32, #tpu.memory_space<vmem>>, vector<8x1024xf32>
    %1 = arith.negf %0 : vector<8x1024xf32>
    %2 = math.exp %1 : vector<8x1024xf32>
    %cst = arith.constant 1.000000e+00 : f32
    %3 = vector.broadcast %cst : f32 to vector<8x1024xf32>
    %4 = arith.addf %3, %2 : vector<8x1024xf32>
    %5 = arith.divf %3, %4 : vector<8x1024xf32>
    %c0_1 = arith.constant 0 : index
    %c0_2 = arith.constant 0 : index
    %6 = vector.load %arg2[%c0_1, %c0_2] : memref<8x1024xf32, #tpu.memory_space<vmem>>, vector<8x1024xf32>
    tpu.vector_store %arg2[%c0_1, %c0_2], %5 {strides = array<i32>} : memref<8x1024xf32, #tpu.memory_space<vmem>>, vector<8x1024xf32>,
    return
  }
  func.func @transform_0(%arg0: i32) -> (i32, i32) {
    %c0_i32 = arith.constant 0 : i32
    %c0_i32_0 = arith.constant 0 : i32
    return %arg0, %c0_i32 : i32, i32
  }
  func.func @transform_1(%arg0: i32) -> (i32, i32) {
    %c0_i32 = arith.constant 0 : i32
    %c0_i32_0 = arith.constant 0 : i32
    return %arg0, %c0_i32 : i32, i32
  }
}

</mosaic_0001>

<llo_original>
// kernel: forward.1
$region0: #{forward.1}
  #allocation0 [shape = 'u32[]', space=smem, size = 0x4, offset = 0x4, fixed_abs, tag = 'smem constant byte address 0x4 - core index']
  #allocation1 [shape = 'u32[144,128]{1,0:T(1,128)}', space=vmem, size = 0x12000, scoped, tag = 'internal scratch']
  %s0 = inlined_call_operand.vmem [shape: f32[8,1024], index: 0, kind: input, shape index: {}, may-alias: {0,1}]
  %s1 = inlined_call_operand.vmem [shape: f32[8,1024], index: 1, kind: output, shape index: {}, may-alias: {0,1}]
  %s2 = sld [smem:[#allocation0]]
  $region14: #{forward.1} parent=0
    _
  %s4 = ssub.s32 1, %s2
  %s5 = scalar_select 0, %s4, %s2
  // Predicated region
  $region2: #{forward.1} parent=0 // pred_check
    _
  $region3: #{forward.1} parent=0 // pred_check_branch
    %7 = sbr.rel (0) target = $region5
  $region4: #{forward.1} parent=0 // pred_region
    _
  $region5: #{forward.1} parent=0 // pred_fallthru
    _
  %v8 = vld [vmem:[%s0] sm:$0xff]
  %v9 = vld [vmem:[%s0 + $0x8] sm:$0xff]
  %v10 = vld [vmem:[%s0 + $0x10] sm:$0xff]
  %v11 = vld [vmem:[%s0 + $0x18] sm:$0xff]
  %v12 = vld [vmem:[%s0 + $0x20] sm:$0xff]
  %v13 = vld [vmem:[%s0 + $0x28] sm:$0xff]
  %v14 = vld [vmem:[%s0 + $0x30] sm:$0xff]
  %v15 = vld [vmem:[%s0 + $0x38] sm:$0xff]
  %v16 = vxor.u32 %v8, 2147483648
  %v17 = vxor.u32 %v9, 2147483648
  %v18 = vxor.u32 %v10, 2147483648
  %v19 = vxor.u32 %v11, 2147483648
  %v20 = vxor.u32 %v12, 2147483648
  %v21 = vxor.u32 %v13, 2147483648
  %v22 = vxor.u32 %v14, 2147483648
  %v23 = vxor.u32 %v15, 2147483648
  %v24 = vmul.f32 %v16, 1.442695
  %v25 = vpow.pop %v24
  %v26 = vmul.f32 %v17, 1.442695
  %v27 = vpow.pop %v26
  %v28 = vmul.f32 %v18, 1.442695
  %v29 = vpow.pop %v28
  %v30 = vmul.f32 %v19, 1.442695
  %v31 = vpow.pop %v30
  %v32 = vmul.f32 %v20, 1.442695
  %v33 = vpow.pop %v32
  %v34 = vmul.f32 %v21, 1.442695
  %v35 = vpow.pop %v34
  %v36 = vmul.f32 %v22, 1.442695
  %v37 = vpow.pop %v36
  %v38 = vmul.f32 %v23, 1.442695
  %v39 = vpow.pop %v38
  %v40 = vadd.f32 %v25, 1.0
  %v41 = vadd.f32 %v27, 1.0
  %v42 = vadd.f32 %v29, 1.0
  %v43 = vadd.f32 %v31, 1.0
  %v44 = vadd.f32 %v33, 1.0
  %v45 = vadd.f32 %v35, 1.0
  %v46 = vadd.f32 %v37, 1.0
  %v47 = vadd.f32 %v39, 1.0
  %v48 = vrcp.pop %v40
  %v49 = vmul.f32 1.0, %v48
  %v50 = vrcp.pop %v41
  %v51 = vmul.f32 1.0, %v50
  %v52 = vrcp.pop %v42
  %v53 = vmul.f32 1.0, %v52
  %v54 = vrcp.pop %v43
  %v55 = vmul.f32 1.0, %v54
  %v56 = vrcp.pop %v44
  %v57 = vmul.f32 1.0, %v56
  %v58 = vrcp.pop %v45
  %v59 = vmul.f32 1.0, %v58
  %v60 = vrcp.pop %v46
  %v61 = vmul.f32 1.0, %v60
  %v62 = vrcp.pop %v47
  %v63 = vmul.f32 1.0, %v62
  %64 = vst [vmem:[%s1] sm:$0xff] %v49
  %65 = vst [vmem:[%s1 + $0x8] sm:$0xff] %v51
  %66 = vst [vmem:[%s1 + $0x10] sm:$0xff] %v53
  %67 = vst [vmem:[%s1 + $0x18] sm:$0xff] %v55
  %68 = vst [vmem:[%s1 + $0x20] sm:$0xff] %v57
  %69 = vst [vmem:[%s1 + $0x28] sm:$0xff] %v59
  %70 = vst [vmem:[%s1 + $0x30] sm:$0xff] %v61
  %71 = vst [vmem:[%s1 + $0x38] sm:$0xff] %v63
  // Predicated region
  $region6: #{forward.1} parent=0 // pred_check
    _
  $region7: #{forward.1} parent=0 // pred_check_branch
    %73 = sbr.rel (0) target = $region9
  $region8: #{forward.1} parent=0 // pred_region
    _
  $region9: #{forward.1} parent=0 // pred_fallthru
    _
  // Predicated region
  $region10: #{forward.1} parent=0 // pred_check
    _
  $region11: #{forward.1} parent=0 // pred_check_branch
    %75 = sbr.rel (0) target = $region13
  $region12: #{forward.1} parent=0 // pred_region
    _
  $region13: #{forward.1} parent=0 // pred_fallthru
    _

</llo_original>
